<compile_context>
chip_gen: v7x
topology: tpu7x:2x2x1
jax: 0.10.0
libtpu: 0.0.40
codegen_flags: <defaults>
</compile_context>

<pallas_src>
import jax
import jax.numpy as jnp
from jax.experimental import pallas as pl
from jax.experimental.pallas import tpu as pltpu


# ----------------------------------------------------------------------------
# Helpers
# ----------------------------------------------------------------------------
def _round_up(x, m):
    return ((x + m - 1) // m) * m


def _tpu_config():
    try:
        kind = jax.devices()[0].device_kind.lower()
    except Exception:  # pragma: no cover
        kind = ""
    is_v7 = "v7" in kind
    older = any(("v%d" % g) in kind for g in (2, 3, 4, 5, 6))
    small_mxu = any(s in kind for s in ("v2", "v3", "v4", "v5 lite", "v5e", "v5lite"))
    return dict(
        kind=kind,
        two_cores=is_v7,                              # v7x: 2 TensorCores/chip
        mxu_align=128 if small_mxu else 256,          # v6e/v7x MXU is 2x256x256
        vmem_cap=(48 << 20) if is_v7 else ((100 << 20) if older else (48 << 20)),
        default_tm=256 if is_v7 else 512,             # big row tiles on 128MiB parts
    )


def _align_feature(d, mxu_align):
    # <=128: pad to 128 (avoid 4x waste on tiny dims); >128: pad to MXU width.
    if d <= 128:
        return _round_up(d, 128)
    return _round_up(d, max(128, mxu_align))


# ----------------------------------------------------------------------------
# Fused kernel
# ----------------------------------------------------------------------------
def _make_fused_mlp_kernel(num_hidden, compute_dtype):
    """kernel(x, [w_i, shift_i]*num_hidden, w_last, b_last, o).

    Hidden feature dims are padded to lane multiples with exact-zero weight
    columns / shifts (ReLU(0)=0 keeps them zero), so no masking is needed.
    The final layer keeps the true out_dim, so log_softmax needs no mask.
    """

    def kernel(*refs):
        x_ref = refs[0]
        o_ref = refs[-1]
        h = x_ref[...].astype(compute_dtype)
        idx = 1
        for _ in range(num_hidden):
            w_ref, s_ref = refs[idx], refs[idx + 1]
            idx += 2
            acc = jnp.dot(h, w_ref[...], preferred_element_type=jnp.float32)
            acc = jnp.maximum(acc + s_ref[...], 0.0)   # folded BN shift + ReLU (f32)
            # TODO(synk): dropout omitted -- F.dropout is identity in eval mode.
            h = acc.astype(compute_dtype)
        w_ref, b_ref = refs[idx], refs[idx + 1]
        y = jnp.dot(h, w_ref[...], preferred_element_type=jnp.float32) + b_ref[...]
        m = jnp.max(y, axis=-1, keepdims=True)
        z = y - m
        lse = jnp.log(jnp.sum(jnp.exp(z), axis=-1, keepdims=True))
        o_ref[...] = (z - lse).astype(o_ref.dtype)

    return kernel


# ----------------------------------------------------------------------------
# One-time parameter preparation (fold BN, pad, cast) -- cache the result.
# ----------------------------------------------------------------------------
def prepare_mlp(params, bn_eps=1e-5, compute_dtype=jnp.float32):
    cfg = _tpu_config()
    ws, bs = params["w"], params["b"]
    num_lin = len(ws)
    num_hidden = num_lin - 1
    in_dim = ws[0].shape[0]
    out_dim = ws[-1].shape[1]

    dims = [in_dim] + [w.shape[1] for w in ws]
    # x and the output keep their true widths (no HBM pad / slice round-trips);
    # hidden widths are padded to lane/MXU multiples.
    pdims = ([in_dim]
             + [_align_feature(d, cfg["mxu_align"]) for d in dims[1:-1]]
             + [out_dim])

    consts = []
    for i in range(num_hidden):
        gamma, beta = params["gamma"][i], params["beta"][i]
        mean, var = params["mean"][i], params["var"][i]
        scale = gamma * jax.lax.rsqrt(var + bn_eps)            # fold in f32
        w_f = ws[i] * scale[None, :]
        shift = (bs[i] - mean) * scale + beta
        w_p = jnp.zeros((pdims[i], pdims[i + 1]), jnp.float32)
        w_p = w_p.at[:dims[i], :dims[i + 1]].set(w_f)
        s_p = jnp.zeros((1, pdims[i + 1]), jnp.float32)
        s_p = s_p.at[0, :dims[i + 1]].set(shift)
        consts += [w_p.astype(compute_dtype), s_p]             # shift stays f32
    w_p = jnp.zeros((pdims[-2], pdims[-1]), jnp.float32)
    w_p = w_p.at[:dims[-2], :].set(ws[-1])
    b_p = jnp.asarray(bs[-1], jnp.float32).reshape(1, out_dim)
    consts += [w_p.astype(compute_dtype), b_p]

    consts = [jax.device_put(jax.block_until_ready(c)) for c in consts]
    return {"consts": consts, "dims": dims, "pdims": pdims,
            "num_hidden": num_hidden, "compute_dtype": compute_dtype, "cfg": cfg}


# ----------------------------------------------------------------------------
# Forward (per-call path: just the pallas_call)
# ----------------------------------------------------------------------------
def mlp_forward(x, prepared, tm=None):
    consts = prepared["consts"]
    pdims = prepared["pdims"]
    num_hidden = prepared["num_hidden"]
    cfg = prepared["cfg"]

    N, in_dim = x.shape
    assert in_dim == pdims[0], "x feature dim does not match prepared params"
    out_dim = pdims[-1]

    n8 = _round_up(max(N, 1), 8)
    if tm is None:
        tm = min(cfg["default_tm"], n8)
        if cfg["two_cores"] and n8 >= 16:
            # >=2 grid steps so ("parallel",) can shard across both v7x cores.
            tm = min(tm, _round_up((n8 + 1) // 2, 8))
    tm = max(8, _round_up(tm, 8))
    n_pad = _round_up(N, tm)

    x_in = x if n_pad == N else jnp.zeros((n_pad, in_dim), x.dtype).at[:N].set(x)

    in_specs = [pl.BlockSpec((tm, in_dim), lambda i: (i, 0))]
    for c in consts:
        r, ccol = c.shape
        in_specs.append(pl.BlockSpec((r, ccol), lambda i: (0, 0)))  # VMEM-resident
    out_spec = pl.BlockSpec((tm, out_dim), lambda i: (i, 0))

    # ---- VMEM budget: resident weights are double-buffered by the default
    # pipeliner, plus double-buffered row tiles + f32 intermediates + headroom.
    weight_bytes = sum(int(c.size) * c.dtype.itemsize for c in consts)
    io_bytes = 2 * tm * (in_dim * x.dtype.itemsize + out_dim * 4)
    act_bytes = 2 * tm * max(pdims) * 4
    needed = 2 * weight_bytes + io_bytes + act_bytes + (2 << 20)
    if needed > cfg["vmem_cap"]:
        # TODO(synk): add a K/N-tiled multi-pass path for very wide layers.
        raise ValueError(
            "Resident-weight MLP kernel needs ~%d MiB VMEM, over the ~%d MiB "
            "budget on %r; reduce hidden size or tile the feature dims."
            % (needed >> 20, cfg["vmem_cap"] >> 20, cfg["kind"]))
    vmem_limit = int(min(cfg["vmem_cap"], max(16 << 20, needed)))

    kernel = _make_fused_mlp_kernel(num_hidden, prepared["compute_dtype"])
    out = pl.pallas_call(
        kernel,
        out_shape=jax.ShapeDtypeStruct((n_pad, out_dim), x.dtype),
        grid_spec=pl.GridSpec(
            grid=(n_pad // tm,),
            in_specs=in_specs,
            out_specs=out_spec,
        ),
        compiler_params=pltpu.CompilerParams(
            dimension_semantics=("parallel",),
            vmem_limit_bytes=vmem_limit,
        ),
    )(x_in, *consts)

    return out if n_pad == N else out[:N]


# ----------------------------------------------------------------------------
# Parameter init (torch-Linear-like, fresh BatchNorm running stats)
# ----------------------------------------------------------------------------
def init_params(key, in_channels, hidden_channels, out_channels, num_layers):
    dims = [in_channels] + [hidden_channels] * (num_layers - 1) + [out_channels]
    ws, bs = [], []
    gammas, betas, means, variances = [], [], [], []
    for i in range(num_layers):
        key, k1, k2 = jax.random.split(key, 3)
        fan_in, fan_out = dims[i], dims[i + 1]
        bound = 1.0 / jnp.sqrt(fan_in)
        ws.append(jax.random.uniform(k1, (fan_in, fan_out), jnp.float32,
                                     -bound, bound))
        bs.append(jax.random.uniform(k2, (fan_out,), jnp.float32,
                                     -bound, bound))
        if i < num_layers - 1:
            key, k3, k4 = jax.random.split(key, 3)
            gammas.append(1.0 + 0.1 * jax.random.normal(k3, (fan_out,),
                                                        jnp.float32))
            betas.append(0.1 * jax.random.normal(k4, (fan_out,), jnp.float32))
            means.append(jnp.zeros((fan_out,), jnp.float32))
            variances.append(jnp.ones((fan_out,), jnp.float32))
    return {"w": ws, "b": bs, "gamma": gammas, "beta": betas,
            "mean": means, "var": variances}


if __name__ == "__main__":
    batch = 16
    in_channels = 32
    hidden_channels = 64
    out_channels = 32
    num_layers = 3
    dropout = 0.5  # identity in eval-mode forward

    key = jax.random.PRNGKey(0)
    key, kx = jax.random.split(key)
    x = jax.random.normal(kx, (batch, in_channels), jnp.float32)
    params = init_params(key, in_channels, hidden_channels, out_channels,
                         num_layers)

    # Reference in plain JAX (same eval-mode semantics).
    def ref(x, params, eps=1e-5):
        h = x
        for i in range(len(params["w"]) - 1):
            h = h @ params["w"][i] + params["b"][i]
            h = (h - params["mean"][i]) / jnp.sqrt(params["var"][i] + eps)
            h = h * params["gamma"][i] + params["beta"][i]
            h = jnp.maximum(h, 0.0)
        h = h @ params["w"][-1] + params["b"][-1]
        return jax.nn.log_softmax(h, axis=-1)

    expected = ref(x, params)

    # f32 path (bit-accurate check).
    prep_f32 = prepare_mlp(params, compute_dtype=jnp.float32)
    out_f32 = jax.block_until_ready(mlp_forward(x, prep_f32))
    assert out_f32.shape == (batch, out_channels)
    assert jnp.allclose(out_f32, expected, atol=1e-5, rtol=1e-5), (
        float(jnp.max(jnp.abs(out_f32 - expected))))

    # bf16 matmul path (MXU-native on v6e/v7x); epilogue stays f32.
    prep_bf16 = prepare_mlp(params, compute_dtype=jnp.bfloat16)
    out_bf16 = jax.block_until_ready(mlp_forward(x, prep_bf16))
    assert out_bf16.shape == (batch, out_channels)
    assert jnp.allclose(out_bf16, expected, atol=1e-1, rtol=1e-1), (
        float(jnp.max(jnp.abs(out_bf16 - expected))))

    print("KERNEL_OK")
</pallas_src>

<mosaic_0001>
module attributes {stable_mosaic.version = 11 : i64} {
  func.func @kernel(%arg0: i32, %arg1: memref<16x32xf32, #tpu.memory_space<vmem>>, %arg2: memref<32x128xf32, #tpu.memory_space<vmem>>, %arg3: memref<1x128xf32, #tpu.memory_space<vmem>>, %arg4: memref<128x128xf32, #tpu.memory_space<vmem>>, %arg5: memref<1x128xf32, #tpu.memory_space<vmem>>, %arg6: memref<128x32xf32, #tpu.memory_space<vmem>>, %arg7: memref<1x32xf32, #tpu.memory_space<vmem>>, %arg8: memref<16x32xf32, #tpu.memory_space<vmem>>) attributes {dimension_semantics = [#tpu.dimension_semantics<parallel>], iteration_bounds = array<i64: 1>, scalar_prefetch = 0 : i64, scratch_operands = 0 : i64, tpu.core_type = #tpu.core_type<tc>, window_params = [{transform_indices = @transform_0, window_bounds = array<i64: 16, 32>}, {pipeline_mode = #tpu.pipeline_mode<synchronous>, transform_indices = @transform_1, window_bounds = array<i64: 32, 128>}, {pipeline_mode = #tpu.pipeline_mode<synchronous>, transform_indices = @transform_2, window_bounds = array<i64: 1, 128>}, {pipeline_mode = #tpu.pipeline_mode<synchronous>, transform_indices = @transform_3, window_bounds = array<i64: 128, 128>}, {pipeline_mode = #tpu.pipeline_mode<synchronous>, transform_indices = @transform_4, window_bounds = array<i64: 1, 128>}, {pipeline_mode = #tpu.pipeline_mode<synchronous>, transform_indices = @transform_5, window_bounds = array<i64: 128, 32>}, {pipeline_mode = #tpu.pipeline_mode<synchronous>, transform_indices = @transform_6, window_bounds = array<i64: 1, 32>}, {transform_indices = @transform_7, window_bounds = array<i64: 16, 32>}]} {
    %c0 = arith.constant 0 : index
    %c0_0 = arith.constant 0 : index
    %0 = vector.load %arg1[%c0, %c0_0] : memref<16x32xf32, #tpu.memory_space<vmem>>, vector<16x32xf32>
    %c0_1 = arith.constant 0 : index
    %c0_2 = arith.constant 0 : index
    %1 = vector.load %arg2[%c0_1, %c0_2] : memref<32x128xf32, #tpu.memory_space<vmem>>, vector<32x128xf32>
    %cst = arith.constant dense<0.000000e+00> : vector<16x128xf32>
    %2 = tpu.matmul %0, %1, %cst {dimension_numbers = #tpu.dot_dimension_numbers<[1], [0], [0], [1], [0, 0, 1, 1], [], []>} : vector<16x32xf32>, vector<32x128xf32>, vector<16x128xf32> -> vector<16x128xf32>
    %c0_3 = arith.constant 0 : index
    %c0_4 = arith.constant 0 : index
    %3 = vector.load %arg3[%c0_3, %c0_4] : memref<1x128xf32, #tpu.memory_space<vmem>>, vector<1x128xf32>
    %4 = vector.broadcast %3 : vector<1x128xf32> to vector<16x128xf32>
    %5 = arith.addf %2, %4 : vector<16x128xf32>
    %cst_5 = arith.constant 0.000000e+00 : f32
    %6 = vector.broadcast %cst_5 : f32 to vector<16x128xf32>
    %7 = arith.maximumf %5, %6 : vector<16x128xf32>
    %c0_6 = arith.constant 0 : index
    %c0_7 = arith.constant 0 : index
    %8 = vector.load %arg4[%c0_6, %c0_7] : memref<128x128xf32, #tpu.memory_space<vmem>>, vector<128x128xf32>
    %cst_8 = arith.constant dense<0.000000e+00> : vector<16x128xf32>
    %9 = tpu.matmul %7, %8, %cst_8 {dimension_numbers = #tpu.dot_dimension_numbers<[1], [0], [0], [1], [0, 0, 1, 1], [], []>} : vector<16x128xf32>, vector<128x128xf32>, vector<16x128xf32> -> vector<16x128xf32>
    %c0_9 = arith.constant 0 : index
    %c0_10 = arith.constant 0 : index
    %10 = vector.load %arg5[%c0_9, %c0_10] : memref<1x128xf32, #tpu.memory_space<vmem>>, vector<1x128xf32>
    %11 = vector.broadcast %10 : vector<1x128xf32> to vector<16x128xf32>
    %12 = arith.addf %9, %11 : vector<16x128xf32>
    %cst_11 = arith.constant 0.000000e+00 : f32
    %13 = vector.broadcast %cst_11 : f32 to vector<16x128xf32>
    %14 = arith.maximumf %12, %13 : vector<16x128xf32>
    %c0_12 = arith.constant 0 : index
    %c0_13 = arith.constant 0 : index
    %15 = vector.load %arg6[%c0_12, %c0_13] : memref<128x32xf32, #tpu.memory_space<vmem>>, vector<128x32xf32>
    %cst_14 = arith.constant dense<0.000000e+00> : vector<16x32xf32>
    %16 = tpu.matmul %14, %15, %cst_14 {dimension_numbers = #tpu.dot_dimension_numbers<[1], [0], [0], [1], [0, 0, 1, 1], [], []>} : vector<16x128xf32>, vector<128x32xf32>, vector<16x32xf32> -> vector<16x32xf32>
    %c0_15 = arith.constant 0 : index
    %c0_16 = arith.constant 0 : index
    %17 = vector.load %arg7[%c0_15, %c0_16] : memref<1x32xf32, #tpu.memory_space<vmem>>, vector<1x32xf32>
    %18 = vector.broadcast %17 : vector<1x32xf32> to vector<16x32xf32>
    %19 = arith.addf %16, %18 : vector<16x32xf32>
    %cst_17 = arith.constant dense<0xFF800000> : vector<16xf32>
    %20 = vector.multi_reduction <maximumf>, %19, %cst_17 [1] : vector<16x32xf32> to vector<16xf32>
    %21 = vector.shape_cast %20 : vector<16xf32> to vector<16x1xf32>
    %22 = vector.broadcast %21 : vector<16x1xf32> to vector<16x32xf32>
    %23 = arith.subf %19, %22 : vector<16x32xf32>
    %24 = math.exp %23 : vector<16x32xf32>
    %cst_18 = arith.constant dense<0.000000e+00> : vector<16xf32>
    %25 = vector.multi_reduction <add>, %24, %cst_18 [1] : vector<16x32xf32> to vector<16xf32>
    %26 = vector.shape_cast %25 : vector<16xf32> to vector<16x1xf32>
    %27 = math.log %26 : vector<16x1xf32>
    %28 = vector.broadcast %27 : vector<16x1xf32> to vector<16x32xf32>
    %29 = arith.subf %23, %28 : vector<16x32xf32>
    %c0_19 = arith.constant 0 : index
    %c0_20 = arith.constant 0 : index
    %30 = vector.load %arg8[%c0_19, %c0_20] : memref<16x32xf32, #tpu.memory_space<vmem>>, vector<16x32xf32>
    tpu.vector_store %arg8[%c0_19, %c0_20], %29 {strides = array<i32>} : memref<16x32xf32, #tpu.memory_space<vmem>>, vector<16x32xf32>,
    return
  }
  func.func @transform_0(%arg0: i32) -> (i32, i32) {
    %c0_i32 = arith.constant 0 : i32
    %c0_i32_0 = arith.constant 0 : i32
    return %arg0, %c0_i32 : i32, i32
  }
  func.func @transform_1(%arg0: i32) -> (i32, i32) {
    %c0_i32 = arith.constant 0 : i32
    %c0_i32_0 = arith.constant 0 : i32
    %c0_i32_1 = arith.constant 0 : i32
    return %c0_i32, %c0_i32_0 : i32, i32
  }
  func.func @transform_2(%arg0: i32) -> (i32, i32) {
    %c0_i32 = arith.constant 0 : i32
    %c0_i32_0 = arith.constant 0 : i32
    %c0_i32_1 = arith.constant 0 : i32
    return %c0_i32, %c0_i32_0 : i32, i32
  }
  func.func @transform_3(%arg0: i32) -> (i32, i32) {
    %c0_i32 = arith.constant 0 : i32
    %c0_i32_0 = arith.constant 0 : i32
    %c0_i32_1 = arith.constant 0 : i32
    return %c0_i32, %c0_i32_0 : i32, i32
  }
  func.func @transform_4(%arg0: i32) -> (i32, i32) {
    %c0_i32 = arith.constant 0 : i32
    %c0_i32_0 = arith.constant 0 : i32
    %c0_i32_1 = arith.constant 0 : i32
    return %c0_i32, %c0_i32_0 : i32, i32
  }
  func.func @transform_5(%arg0: i32) -> (i32, i32) {
    %c0_i32 = arith.constant 0 : i32
    %c0_i32_0 = arith.constant 0 : i32
    %c0_i32_1 = arith.constant 0 : i32
    return %c0_i32, %c0_i32_0 : i32, i32
  }
  func.func @transform_6(%arg0: i32) -> (i32, i32) {
    %c0_i32 = arith.constant 0 : i32
    %c0_i32_0 = arith.constant 0 : i32
    %c0_i32_1 = arith.constant 0 : i32
    return %c0_i32, %c0_i32_0 : i32, i32
  }
  func.func @transform_7(%arg0: i32) -> (i32, i32) {
    %c0_i32 = arith.constant 0 : i32
    %c0_i32_0 = arith.constant 0 : i32
    return %arg0, %c0_i32 : i32, i32
  }
}

</mosaic_0001>

<llo_original>
// kernel: tpu_custom_call.1
$region0: #{tpu_custom_call.1}
  #allocation0 [shape = 'u32[]', space=smem, size = 0x4, offset = 0x4, fixed_abs, tag = 'smem constant byte address 0x4 - core index']
  #allocation1 [shape = 'u32[144,128]{1,0:T(1,128)}', space=vmem, size = 0x12000, scoped, tag = 'internal scratch']
  %s0 = inlined_call_operand.hbm [shape: f32[16,32], index: 0, kind: input, shape index: {}]
  %s1 = inlined_call_operand.vmem [shape: f32[32,128], index: 1, kind: input, shape index: {}]
  %s2 = inlined_call_operand.vmem [shape: f32[1,128], index: 2, kind: input, shape index: {}]
  %s3 = inlined_call_operand.vmem [shape: f32[128,128], index: 3, kind: input, shape index: {}]
  %s4 = inlined_call_operand.vmem [shape: f32[1,128], index: 4, kind: input, shape index: {}]
  %s5 = inlined_call_operand.vmem [shape: f32[128,32], index: 5, kind: input, shape index: {}]
  %s6 = inlined_call_operand.vmem [shape: f32[1,32], index: 6, kind: input, shape index: {}]
  %s7 = inlined_call_operand.hbm [shape: f32[16,32], index: 7, kind: output, shape index: {}]
  %s8 = sld [smem:[#allocation0]]
  $region42: #{tpu_custom_call.1} parent=0
    _
  %s10 = ssub.s32 1, %s8
  %s11 = scalar_select 0, %s10, %s8
  $region1: #{tpu_custom_call.1} parent=0
    #allocation2 [shape = 'u8[8192]{0}', space=vmem, size = 0x2000, scoped, tag = 'input window, operand 0, single buffered']
    #allocation3 [shape = 's32[1]{0}', space=sflag, size = 0x4, scoped, tag = 'scoped memory for tpu_custom_call.1']
    #allocation4 [shape = 's32[1]{0}', space=sflag, size = 0x4, scoped, tag = 'scoped memory for tpu_custom_call.1']
    #allocation5 [shape = 'u8[8192]{0}', space=vmem, size = 0x2000, scoped, tag = 'output window, operand 0, single buffered']
    %12 = vsyncpa [#allocation3], 0
    %13 = vsyncpa [#allocation4], 0
    // Predicated region
    $region2: #{tpu_custom_call.1} parent=1 // pred_check
      _
    $region3: #{tpu_custom_call.1} parent=1 // pred_check_branch
      %15 = sbr.rel (0) target = $region5
    $region4: #{tpu_custom_call.1} parent=1 // pred_region
      %s17 = ssub.s32 256, 256
      %18 = vsyncadd [#allocation3], %s17
      %s19 = sshll.u32 [#allocation2], 4
      %s20 = int_to_ptr.vmem [resolvable:$true] %s19
      %25 = dma.hbm_to_vmem [thread:$0]  %s0, 256, %s20, [#allocation3], 128, 128, 8
    $region5: #{tpu_custom_call.1} parent=1 // pred_fallthru
      _
    // Predicated region
    $region6: #{tpu_custom_call.1} parent=1 // pred_check
      _
    $region7: #{tpu_custom_call.1} parent=1 // pred_check_branch
      %27 = sbr.rel (0) target = $region9
    $region8: #{tpu_custom_call.1} parent=1 // pred_region
      _
    $region9: #{tpu_custom_call.1} parent=1 // pred_fallthru
      _
    // Predicated region
    $region10: #{tpu_custom_call.1} parent=1 // pred_check
      _
    $region11: #{tpu_custom_call.1} parent=1 // pred_check_branch
      %29 = sbr.rel (0) target = $region13
    $region12: #{tpu_custom_call.1} parent=1 // pred_region
      _
    $region13: #{tpu_custom_call.1} parent=1 // pred_fallthru
      _
    // Predicated region
    $region14: #{tpu_custom_call.1} parent=1 // pred_check
      _
    $region15: #{tpu_custom_call.1} parent=1 // pred_check_branch
      %31 = sbr.rel (0) target = $region17
    $region16: #{tpu_custom_call.1} parent=1 // pred_region
      _
    $region17: #{tpu_custom_call.1} parent=1 // pred_fallthru
      _
    // Predicated region
    $region18: #{tpu_custom_call.1} parent=1 // pred_check
      _
    $region19: #{tpu_custom_call.1} parent=1 // pred_check_branch
      %33 = sbr.rel (0) target = $region21
    $region20: #{tpu_custom_call.1} parent=1 // pred_region
      _
    $region21: #{tpu_custom_call.1} parent=1 // pred_fallthru
      _
    // Predicated region
    $region22: #{tpu_custom_call.1} parent=1 // pred_check
      _
    $region23: #{tpu_custom_call.1} parent=1 // pred_check_branch
      %35 = sbr.rel (0) target = $region25
    $region24: #{tpu_custom_call.1} parent=1 // pred_region
      _
    $region25: #{tpu_custom_call.1} parent=1 // pred_fallthru
      _
    // Predicated region
    $region26: #{tpu_custom_call.1} parent=1 // pred_check
      _
    $region27: #{tpu_custom_call.1} parent=1 // pred_check_branch
      %37 = sbr.rel (0) target = $region29
    $region28: #{tpu_custom_call.1} parent=1 // pred_region
      _
    $region29: #{tpu_custom_call.1} parent=1 // pred_fallthru
      _
    // Predicated region
    $region30: #{tpu_custom_call.1} parent=1 // pred_check
      _
    $region31: #{tpu_custom_call.1} parent=1 // pred_check_branch
      %39 = sbr.rel (0) target = $region33
    $region32: #{tpu_custom_call.1} parent=1 // pred_region
      %40 = dma.done [#allocation3], 256
    $region33: #{tpu_custom_call.1} parent=1 // pred_fallthru
      _
    %v41 = vld [vmem:[#allocation2] sm:$0xff]
    %v42 = vld [vmem:[#allocation2 + $0x8] sm:$0xff]
    %v43 = vld [vmem:[%s1] sm:$0xff]
    %v44 = vld [vmem:[%s1 + $0x8] sm:$0xff]
    %v45 = vld [vmem:[%s1 + $0x10] sm:$0xff]
    %v46 = vld [vmem:[%s1 + $0x18] sm:$0xff]
    %v47 = vld [vmem:[%s2] sm:$0x1]
    %v49 = vlaneseq
    %v50 = vshrl.u32 %v49, 7
    %v51 = vsub.s32 0, %v50
    %v52 = vrot.slane %v47, %v51
    %vm54 = vcmask 261120
    %v56 = vsel %vm54, %v41, 0
    %v59 = vsel %vm54, %v42, 0
    %61 = vmatprep.subr.mxu0 0.0
    %62 = vmatpush1.msra.mxu0 %v43
    %63 = vmatprep.subr.mxu0 0.0
    %64 = vmatpush1.msra.mxu0 %v44
    %65 = vmatprep.subr.mxu0 0.0
    %66 = vmatpush1.msra.mxu0 %v45
    %67 = vmatprep.subr.mxu0 0.0
    %68 = vmatpush1.msra.mxu0 %v46
    %69 = vmatprep.subr.mxu0 0.0
    %70 = vmatpush1.msra.mxu0 0.0
    %71 = vmatprep.subr.mxu0 0.0
    %72 = vmatpush1.msra.mxu0 0.0
    %73 = vmatprep.subr.mxu0 0.0
    %74 = vmatpush1.msra.mxu0 0.0
    %75 = vmatprep.subr.mxu0 0.0
    %76 = vmatpush1.msra.mxu0 0.0
    %77 = vmatprep.subr.mxu0 0.0
    %78 = vmatpush1.msra.mxu0 0.0
    %79 = vmatprep.subr.mxu0 0.0
    %80 = vmatpush1.msra.mxu0 0.0
    %81 = vmatprep.subr.mxu0 0.0
    %82 = vmatpush1.msra.mxu0 0.0
    %83 = vmatprep.subr.mxu0 0.0
    %84 = vmatpush1.msra.mxu0 0.0
    %85 = vmatprep.subr.mxu0 0.0
    %86 = vmatpush1.msra.mxu0 0.0
    %87 = vmatprep.subr.mxu0 0.0
    %88 = vmatpush1.msra.mxu0 0.0
    %89 = vmatprep.subr.mxu0 0.0
    %90 = vmatpush1.msra.mxu0 0.0
    %91 = vmatprep.subr.mxu0 0.0
    %92 = vmatpush1.msra.mxu0 0.0
    %93 = vmatprep.subr.mxu0 0.0
    %94 = vmatpush1.msra.mxu0 0.0
    %95 = vmatprep.subr.mxu0 0.0
    %96 = vmatpush1.msra.mxu0 0.0
    %97 = vmatprep.subr.mxu0 0.0
    %98 = vmatpush1.msra.mxu0 0.0
    %99 = vmatprep.subr.mxu0 0.0
    %100 = vmatpush1.msra.mxu0 0.0
    %101 = vmatprep.subr.mxu0 0.0
    %102 = vmatpush1.msra.mxu0 0.0
    %103 = vmatprep.subr.mxu0 0.0
    %104 = vmatpush1.msra.mxu0 0.0
    %105 = vmatprep.subr.mxu0 0.0
    %106 = vmatpush1.msra.mxu0 0.0
    %107 = vmatprep.subr.mxu0 0.0
    %108 = vmatpush1.msra.mxu0 0.0
    %109 = vmatprep.subr.mxu0 0.0
    %110 = vmatpush1.msra.mxu0 0.0
    %111 = vmatprep.subr.mxu0 0.0
    %112 = vmatpush1.msra.mxu0 0.0
    %113 = vmatprep.subr.mxu0 0.0
    %114 = vmatpush1.msra.mxu0 0.0
    %115 = vmatprep.subr.mxu0 0.0
    %116 = vmatpush1.msra.mxu0 0.0
    %117 = vmatprep.subr.mxu0 0.0
    %118 = vmatpush1.msra.mxu0 0.0
    %119 = vmatprep.subr.mxu0 0.0
    %120 = vmatpush1.msra.mxu0 0.0
    %121 = vmatprep.subr.mxu0 0.0
    %122 = vmatpush1.msra.mxu0 0.0
    %123 = vmatprep.subr.mxu0 0.0
    %124 = vmatpush1.msra.mxu0 0.0
    %125 = vmatprep.mubr.f32.mxu0 0.0
    %126 = vmatmul.mubr.f32.gmra.mrb[0].mxu0 %v56
    %v127 = vpop.f32.mrb[0].mxu0
    %v128 = vadd.f32 %v52, %v127
    %v129 = vpop.f32.mrb[0].mxu0
    %130 = vmatprep.mubr.f32.mxu0 0.0
    %131 = vmatmul.mubr.f32.gmra.mrb[0].mxu0 %v59
    %v132 = vpop.f32.mrb[0].mxu0
    %v133 = vadd.f32 %v52, %v132
    %v134 = vpop.f32.mrb[0].mxu0
    %135 = vdwg.mxu0
    %v136 = vmax.f32 %v128, 0.0
    %v137 = vmax.f32 %v133, 0.0
    %v138 = vld [vmem:[%s3] sm:$0xff]
    %v139 = vld [vmem:[%s3 + $0x8] sm:$0xff]
    %v140 = vld [vmem:[%s3 + $0x10] sm:$0xff]
    %v141 = vld [vmem:[%s3 + $0x18] sm:$0xff]
    %v142 = vld [vmem:[%s3 + $0x20] sm:$0xff]
    %v143 = vld [vmem:[%s3 + $0x28] sm:$0xff]
    %v144 = vld [vmem:[%s3 + $0x30] sm:$0xff]
    %v145 = vld [vmem:[%s3 + $0x38] sm:$0xff]
    %v146 = vld [vmem:[%s3 + $0x40] sm:$0xff]
    %v147 = vld [vmem:[%s3 + $0x48] sm:$0xff]
    %v148 = vld [vmem:[%s3 + $0x50] sm:$0xff]
    %v149 = vld [vmem:[%s3 + $0x58] sm:$0xff]
    %v150 = vld [vmem:[%s3 + $0x60] sm:$0xff]
    %v151 = vld [vmem:[%s3 + $0x68] sm:$0xff]
    %v152 = vld [vmem:[%s3 + $0x70] sm:$0xff]
    %v153 = vld [vmem:[%s3 + $0x78] sm:$0xff]
    %v154 = vld [vmem:[%s4] sm:$0x1]
    %v156 = vlaneseq
    %v157 = vshrl.u32 %v156, 7
    %v158 = vsub.s32 0, %v157
    %v159 = vrot.slane %v154, %v158
    %161 = vmatprep.subr.mxu0 0.0
    %162 = vmatpush1.msra.mxu0 %v138
    %163 = vmatprep.subr.mxu0 0.0
    %164 = vmatpush1.msra.mxu0 %v139
    %165 = vmatprep.subr.mxu0 0.0
    %166 = vmatpush1.msra.mxu0 %v140
    %167 = vmatprep.subr.mxu0 0.0
    %168 = vmatpush1.msra.mxu0 %v141
    %169 = vmatprep.subr.mxu0 0.0
    %170 = vmatpush1.msra.mxu0 %v142
    %171 = vmatprep.subr.mxu0 0.0
    %172 = vmatpush1.msra.mxu0 %v143
    %173 = vmatprep.subr.mxu0 0.0
    %174 = vmatpush1.msra.mxu0 %v144
    %175 = vmatprep.subr.mxu0 0.0
    %176 = vmatpush1.msra.mxu0 %v145
    %177 = vmatprep.subr.mxu0 0.0
    %178 = vmatpush1.msra.mxu0 %v146
    %179 = vmatprep.subr.mxu0 0.0
    %180 = vmatpush1.msra.mxu0 %v147
    %181 = vmatprep.subr.mxu0 0.0
    %182 = vmatpush1.msra.mxu0 %v148
    %183 = vmatprep.subr.mxu0 0.0
    %184 = vmatpush1.msra.mxu0 %v149
    %185 = vmatprep.subr.mxu0 0.0
    %186 = vmatpush1.msra.mxu0 %v150
    %187 = vmatprep.subr.mxu0 0.0
    %188 = vmatpush1.msra.mxu0 %v151
    %189 = vmatprep.subr.mxu0 0.0
    %190 = vmatpush1.msra.mxu0 %v152
    %191 = vmatprep.subr.mxu0 0.0
    %192 = vmatpush1.msra.mxu0 %v153
    %193 = vmatprep.subr.mxu0 0.0
    %194 = vmatpush1.msra.mxu0 0.0
    %195 = vmatprep.subr.mxu0 0.0
    %196 = vmatpush1.msra.mxu0 0.0
    %197 = vmatprep.subr.mxu0 0.0
    %198 = vmatpush1.msra.mxu0 0.0
    %199 = vmatprep.subr.mxu0 0.0
    %200 = vmatpush1.msra.mxu0 0.0
    %201 = vmatprep.subr.mxu0 0.0
    %202 = vmatpush1.msra.mxu0 0.0
    %203 = vmatprep.subr.mxu0 0.0
    %204 = vmatpush1.msra.mxu0 0.0
    %205 = vmatprep.subr.mxu0 0.0
    %206 = vmatpush1.msra.mxu0 0.0
    %207 = vmatprep.subr.mxu0 0.0
    %208 = vmatpush1.msra.mxu0 0.0
    %209 = vmatprep.subr.mxu0 0.0
    %210 = vmatpush1.msra.mxu0 0.0
    %211 = vmatprep.subr.mxu0 0.0
    %212 = vmatpush1.msra.mxu0 0.0
    %213 = vmatprep.subr.mxu0 0.0
    %214 = vmatpush1.msra.mxu0 0.0
    %215 = vmatprep.subr.mxu0 0.0
    %216 = vmatpush1.msra.mxu0 0.0
    %217 = vmatprep.subr.mxu0 0.0
    %218 = vmatpush1.msra.mxu0 0.0
    %219 = vmatprep.subr.mxu0 0.0
    %220 = vmatpush1.msra.mxu0 0.0
    %221 = vmatprep.subr.mxu0 0.0
    %222 = vmatpush1.msra.mxu0 0.0
    %223 = vmatprep.subr.mxu0 0.0
    %224 = vmatpush1.msra.mxu0 0.0
    %225 = vmatprep.mubr.f32.mxu0 0.0
    %226 = vmatmul.mubr.f32.gmra.mrb[0].mxu0 %v136
    %v227 = vpop.f32.mrb[0].mxu0
    %v228 = vadd.f32 %v159, %v227
    %v229 = vpop.f32.mrb[0].mxu0
    %230 = vmatprep.mubr.f32.mxu0 0.0
    %231 = vmatmul.mubr.f32.gmra.mrb[0].mxu0 %v137
    %v232 = vpop.f32.mrb[0].mxu0
    %v233 = vadd.f32 %v159, %v232
    %v234 = vpop.f32.mrb[0].mxu0
    %235 = vdwg.mxu0
    %v236 = vmax.f32 %v228, 0.0
    %v237 = vmax.f32 %v233, 0.0
    %v238 = vld [vmem:[%s5] sm:$0xff]
    %v239 = vld [vmem:[%s5 + $0x8] sm:$0xff]
    %v240 = vld [vmem:[%s5 + $0x10] sm:$0xff]
    %v241 = vld [vmem:[%s5 + $0x18] sm:$0xff]
    %v242 = vld [vmem:[%s5 + $0x20] sm:$0xff]
    %v243 = vld [vmem:[%s5 + $0x28] sm:$0xff]
    %v244 = vld [vmem:[%s5 + $0x30] sm:$0xff]
    %v245 = vld [vmem:[%s5 + $0x38] sm:$0xff]
    %v246 = vld [vmem:[%s5 + $0x40] sm:$0xff]
    %v247 = vld [vmem:[%s5 + $0x48] sm:$0xff]
    %v248 = vld [vmem:[%s5 + $0x50] sm:$0xff]
    %v249 = vld [vmem:[%s5 + $0x58] sm:$0xff]
    %v250 = vld [vmem:[%s5 + $0x60] sm:$0xff]
    %v251 = vld [vmem:[%s5 + $0x68] sm:$0xff]
    %v252 = vld [vmem:[%s5 + $0x70] sm:$0xff]
    %v253 = vld [vmem:[%s5 + $0x78] sm:$0xff]
    %v254 = vld [vmem:[%s6] sm:$0x1]
    %v256 = vlaneseq
    %v257 = vshrl.u32 %v256, 7
    %v258 = vsub.s32 0, %v257
    %v259 = vrot.slane %v254, %v258
    %261 = vmatprep.subr.mxu0 0.0
    %262 = vmatpush1.msra.mxu0 %v238
    %263 = vmatprep.subr.mxu0 0.0
    %264 = vmatpush1.msra.mxu0 %v239
    %265 = vmatprep.subr.mxu0 0.0
    %266 = vmatpush1.msra.mxu0 %v240
    %267 = vmatprep.subr.mxu0 0.0
    %268 = vmatpush1.msra.mxu0 %v241
    %269 = vmatprep.subr.mxu0 0.0
    %270 = vmatpush1.msra.mxu0 %v242
    %271 = vmatprep.subr.mxu0 0.0
    %272 = vmatpush1.msra.mxu0 %v243
    %273 = vmatprep.subr.mxu0 0.0
    %274 = vmatpush1.msra.mxu0 %v244
    %275 = vmatprep.subr.mxu0 0.0
    %276 = vmatpush1.msra.mxu0 %v245
    %277 = vmatprep.subr.mxu0 0.0
    %278 = vmatpush1.msra.mxu0 %v246
    %279 = vmatprep.subr.mxu0 0.0
    %280 = vmatpush1.msra.mxu0 %v247
    %281 = vmatprep.subr.mxu0 0.0
    %282 = vmatpush1.msra.mxu0 %v248
    %283 = vmatprep.subr.mxu0 0.0
    %284 = vmatpush1.msra.mxu0 %v249
    %285 = vmatprep.subr.mxu0 0.0
    %286 = vmatpush1.msra.mxu0 %v250
    %287 = vmatprep.subr.mxu0 0.0
    %288 = vmatpush1.msra.mxu0 %v251
    %289 = vmatprep.subr.mxu0 0.0
    %290 = vmatpush1.msra.mxu0 %v252
    %291 = vmatprep.subr.mxu0 0.0
    %292 = vmatpush1.msra.mxu0 %v253
    %293 = vmatprep.subr.mxu0 0.0
    %294 = vmatpush1.msra.mxu0 0.0
    %295 = vmatprep.subr.mxu0 0.0
    %296 = vmatpush1.msra.mxu0 0.0
    %297 = vmatprep.subr.mxu0 0.0
    %298 = vmatpush1.msra.mxu0 0.0
    %299 = vmatprep.subr.mxu0 0.0
    %300 = vmatpush1.msra.mxu0 0.0
    %301 = vmatprep.subr.mxu0 0.0
    %302 = vmatpush1.msra.mxu0 0.0
    %303 = vmatprep.subr.mxu0 0.0
    %304 = vmatpush1.msra.mxu0 0.0
    %305 = vmatprep.subr.mxu0 0.0
    %306 = vmatpush1.msra.mxu0 0.0
    %307 = vmatprep.subr.mxu0 0.0
    %308 = vmatpush1.msra.mxu0 0.0
    %309 = vmatprep.subr.mxu0 0.0
    %310 = vmatpush1.msra.mxu0 0.0
    %311 = vmatprep.subr.mxu0 0.0
    %312 = vmatpush1.msra.mxu0 0.0
    %313 = vmatprep.subr.mxu0 0.0
    %314 = vmatpush1.msra.mxu0 0.0
    %315 = vmatprep.subr.mxu0 0.0
    %316 = vmatpush1.msra.mxu0 0.0
    %317 = vmatprep.subr.mxu0 0.0
    %318 = vmatpush1.msra.mxu0 0.0
    %319 = vmatprep.subr.mxu0 0.0
    %320 = vmatpush1.msra.mxu0 0.0
    %321 = vmatprep.subr.mxu0 0.0
    %322 = vmatpush1.msra.mxu0 0.0
    %323 = vmatprep.subr.mxu0 0.0
    %324 = vmatpush1.msra.mxu0 0.0
    %325 = vmatprep.mubr.f32.mxu0 0.0
    %326 = vmatmul.mubr.f32.gmra.mrb[0].mxu0 %v236
    %v327 = vpop.f32.mrb[0].mxu0
    %v328 = vadd.f32 %v259, %v327
    %v329 = vpop.f32.mrb[0].mxu0
    %330 = vmatprep.mubr.f32.mxu0 0.0
    %331 = vmatmul.mubr.f32.gmra.mrb[0].mxu0 %v237
    %v332 = vpop.f32.mrb[0].mxu0
    %v333 = vadd.f32 %v259, %v332
    %v334 = vpop.f32.mrb[0].mxu0
    %335 = vdwg.mxu0
    %v336 = vsel %vm54, %v328, -inf
    %337 = vmax.xlane.f32.xlu0 %v336
    %v338 = vpop.xlane.xlu0 %337
    %v339 = vsel %vm54, %v333, -inf
    %340 = vmax.xlane.f32.xlu0 %v339
    %v341 = vpop.xlane.xlu0 %340
    %v342 = vsub.f32 %v328, %v338
    %v343 = vsub.f32 %v333, %v341
    %v344 = vmul.f32 %v342, 1.442695
    %v345 = vpow.pop %v344
    %v346 = vmul.f32 %v343, 1.442695
    %v347 = vpow.pop %v346
    %v348 = vsel %vm54, %v345, 0.0
    %349 = vadd.xlane.f32.xlu0 %v348
    %v350 = vpop.xlane.xlu0 %349
    %v351 = vsel %vm54, %v347, 0.0
    %352 = vadd.xlane.f32.xlu0 %v351
    %v353 = vpop.xlane.xlu0 %352
    %v354 = vlog2.pop %v350
    %v355 = vmul.f32 %v354, 0.6931472
    %v356 = vlog2.pop %v353
    %v357 = vmul.f32 %v356, 0.6931472
    %v358 = vsub.f32 %v342, %v355
    %v359 = vsub.f32 %v343, %v357
    %360 = vst.msk [vmem:[#allocation5] sm:$0xff] %vm54, %v358
    %361 = vst.msk [vmem:[#allocation5 + $0x8] sm:$0xff] %vm54, %v359
    // Predicated region
    $region34: #{tpu_custom_call.1} parent=1 // pred_check
      _
    $region35: #{tpu_custom_call.1} parent=1 // pred_check_branch
      %363 = sbr.rel (0) target = $region37
    $region36: #{tpu_custom_call.1} parent=1 // pred_region
      %s365 = ssub.s32 256, 256
      %366 = vsyncadd [#allocation4], %s365
      %s367 = sshll.u32 [#allocation5], 4
      %s368 = int_to_ptr.vmem [resolvable:$true] %s367
      %373 = dma.vmem_to_hbm [thread:$0]  %s368, 256, %s7, [#allocation4], 128, 128, 8
    $region37: #{tpu_custom_call.1} parent=1 // pred_fallthru
      _
    // Predicated region
    $region38: #{tpu_custom_call.1} parent=1 // pred_check
      _
    $region39: #{tpu_custom_call.1} parent=1 // pred_check_branch
      %375 = sbr.rel (0) target = $region41
    $region40: #{tpu_custom_call.1} parent=1 // pred_region
      %376 = dma.done [#allocation4], 256
    $region41: #{tpu_custom_call.1} parent=1 // pred_fallthru
      _
    %377 = vsyncpa [#allocation3], 1
    %378 = vsyncpa [#allocation4], 1

</llo_original>
